<compile_context>
chip_gen: v5e
topology: v5e:2x2
jax: 0.10.0
libtpu: 0.0.40
codegen_flags: <defaults>
</compile_context>

<pallas_src>
import functools

import jax
import jax.numpy as jnp
from jax import lax
from jax.experimental import pallas as pl
from jax.experimental.pallas import tpu as pltpu

D_MODEL = 32
N_HEADS = 4
HEAD_DIM = D_MODEL // N_HEADS
LN_EPS = 1e-5
_APPROX_RECIPROCAL = True      # set False if tolerances ever tighten


def _layernorm(x, gamma, beta):
    # x: (R, D) f32; gamma/beta: (1, D) f32
    mu = jnp.mean(x, axis=-1, keepdims=True)
    var = jnp.mean((x - mu) ** 2, axis=-1, keepdims=True)
    return (x - mu) * lax.rsqrt(var + LN_EPS) * gamma + beta


def _gelu_exact(x):
    # exact (erf-based) GELU, matching torch.nn.GELU() default
    # TODO(synk): tanh-approx GELU would move work VALU->EUP but changes numerics.
    return 0.5 * x * (1.0 + lax.erf(x * 0.7071067811865476))


def _transformer_block_kernel(
    seq_t,                       # static: sequence length T (closure via partial)
    x_ref,                       # (rows, D)  f32, rows = batch_block * T
    w_in_ref,                    # (D, 3D)    bf16
    w_out_ref,                   # (D, D)     bf16
    w1_ref,                      # (D, 4D)    bf16
    w2_ref,                      # (4D, D)    bf16
    vec_ref,                     # (8, 128)   f32 packed biases / LN params
    o_ref,                       # (rows, D)  f32
):
    R, D = x_ref.shape
    T = seq_t
    BB = R // T

    # ---- unpack the packed bias / LayerNorm slab (static slices, no DMA) ----
    b_in  = vec_ref[0:1, 0:3 * D_MODEL]
    b1    = vec_ref[1:2, 0:4 * D_MODEL]
    b_out = vec_ref[2:3, 0:D_MODEL]
    ln1_g = vec_ref[3:4, 0:D_MODEL]
    ln1_b = vec_ref[4:5, 0:D_MODEL]
    b2    = vec_ref[5:6, 0:D_MODEL]
    ln2_g = vec_ref[6:7, 0:D_MODEL]
    ln2_b = vec_ref[7:8, 0:D_MODEL]

    xr = x_ref[...]                                  # (R, D) f32 (residual path)
    xr_bf = xr.astype(jnp.bfloat16)

    # ---- fused QKV projection: one (R,32)x(32,96) MXU matmul, bf16 in / f32 acc
    qkv = jnp.dot(xr_bf, w_in_ref[...],
                  preferred_element_type=jnp.float32) + b_in       # (R, 96) f32

    scale = jnp.float32(1.0 / (HEAD_DIM ** 0.5))

    # ---- additive causal mask, built once and broadcast once (hoisted) ----
    row = lax.broadcasted_iota(jnp.int32, (T, T), 0)
    col = lax.broadcasted_iota(jnp.int32, (T, T), 1)
    mask2d = jnp.where(row >= col, jnp.float32(0.0), jnp.float32(-1e30))
    mask_full = jnp.broadcast_to(mask2d.reshape(1, T, T), (BB, T, T))

    # ---- causal multi-head self-attention ----
    # T=8, HEAD_DIM=8: per-head score/PV contractions are tiny; the head loop is
    # statically unrolled (N_HEADS=4).
    # TODO(synk): a single 'bhtd,bhsd->bhts' two-batch-dim contraction (or a
    # VPU broadcast-mul + XLU lane-reduce formulation) would merge the four
    # MXU push/pop sequences, but multi-batch-dim dot_general / inner-dim
    # transposes are not reliably lowered by Mosaic at these tiny shapes.
    head_outs = []
    for h in range(N_HEADS):                         # static unroll
        lo = h * HEAD_DIM
        q_h = qkv[:, lo:lo + HEAD_DIM].astype(jnp.bfloat16).reshape(BB, T, HEAD_DIM)
        k_h = qkv[:, D_MODEL + lo:D_MODEL + lo + HEAD_DIM] \
            .astype(jnp.bfloat16).reshape(BB, T, HEAD_DIM)
        v_h = qkv[:, 2 * D_MODEL + lo:2 * D_MODEL + lo + HEAD_DIM] \
            .astype(jnp.bfloat16).reshape(BB, T, HEAD_DIM)

        s = jnp.einsum("btd,bsd->bts", q_h, k_h,
                       preferred_element_type=jnp.float32)          # (BB, T, T) f32
        s = s * scale + mask_full
        s = s - jnp.max(s, axis=-1, keepdims=True)
        p = jnp.exp(s)
        denom = jnp.sum(p, axis=-1, keepdims=True)
        p = p * pl.reciprocal(denom, approx=_APPROX_RECIPROCAL)
        o_h = jnp.einsum("bts,bsd->btd", p.astype(jnp.bfloat16), v_h,
                         preferred_element_type=jnp.float32)        # (BB, T, Hd)
        head_outs.append(o_h.reshape(R, HEAD_DIM))

    # lane-concat head outputs -> single K=32 out_proj matmul (was 4x K=8)
    o_cat = jnp.concatenate(head_outs, axis=-1).astype(jnp.bfloat16)  # (R, 32)
    attn = jnp.dot(o_cat, w_out_ref[...],
                   preferred_element_type=jnp.float32) + b_out
    # dropout on attn output: identity (eval mode)

    x1 = _layernorm(xr + attn, ln1_g, ln1_b)

    # ---- feed-forward (bf16 MXU operands, f32 elementwise math) ----
    h1 = _gelu_exact(jnp.dot(x1.astype(jnp.bfloat16), w1_ref[...],
                             preferred_element_type=jnp.float32) + b1)
    h2 = jnp.dot(h1.astype(jnp.bfloat16), w2_ref[...],
                 preferred_element_type=jnp.float32) + b2
    # dropout in ffn: identity (eval mode)
    x2 = _layernorm(x1 + h2, ln2_g, ln2_b)

    o_ref[...] = x2.astype(o_ref.dtype)
    # TODO(synk): lane-dense (rows, T*D=256) I/O slab would unmask the vst path,
    # but the (rows,256)->(rows*T,32) minor-dim split reshape inside the kernel
    # is a relayout Mosaic does not handle robustly at these shapes.


def _pick_batch_block(B, T, target_rows=1024):
    """Largest divisor of B with <= target_rows rows per step; prefer grid>=2."""
    cap = max(1, target_rows // T)
    divisors = [d for d in range(1, B + 1) if B % d == 0]
    feasible = [d for d in divisors if d <= cap] or [1]
    bb = max(feasible)
    if bb == B and B > 1:
        # guarantee >= 2 grid steps so both TensorCores (v7x) get work
        smaller = [d for d in feasible if d < B]
        if smaller:
            bb = max(smaller)
    return bb


def transformer_block(x, params, batch_block=None):
    B, T, D = x.shape
    assert D == D_MODEL
    if batch_block is None:
        batch_block = _pick_batch_block(B, T)
    assert B % batch_block == 0, "batch_block must divide B"
    grid = (B // batch_block,)
    rows_blk = batch_block * T

    # MXU weights in bf16 (halves weight DMA bytes, f32 accumulation in-kernel)
    w_in = params["w_in"].astype(jnp.bfloat16)
    w_out = params["w_out"].astype(jnp.bfloat16)
    w1 = params["w1"].astype(jnp.bfloat16)
    w2 = params["w2"].astype(jnp.bfloat16)

    # pack the eight (1,n) bias / LN vectors into ONE (8,128) f32 slab (1 DMA)
    vec = jnp.zeros((8, 128), jnp.float32)
    vec = vec.at[0, :3 * D].set(params["b_in"].reshape(-1))
    vec = vec.at[1, :4 * D].set(params["b1"].reshape(-1))
    vec = vec.at[2, :D].set(params["b_out"].reshape(-1))
    vec = vec.at[3, :D].set(params["ln1_g"].reshape(-1))
    vec = vec.at[4, :D].set(params["ln1_b"].reshape(-1))
    vec = vec.at[5, :D].set(params["b2"].reshape(-1))
    vec = vec.at[6, :D].set(params["ln2_g"].reshape(-1))
    vec = vec.at[7, :D].set(params["ln2_b"].reshape(-1))

    x2d = x.reshape(B * T, D)          # free row-major flatten in the wrapper

    kernel = functools.partial(_transformer_block_kernel, T)

    in_specs = [
        pl.BlockSpec((rows_blk, D), lambda i: (i, 0)),      # activations
        pl.BlockSpec(w_in.shape, lambda i: (0, 0)),
        pl.BlockSpec(w_out.shape, lambda i: (0, 0)),
        pl.BlockSpec(w1.shape, lambda i: (0, 0)),
        pl.BlockSpec(w2.shape, lambda i: (0, 0)),
        pl.BlockSpec(vec.shape, lambda i: (0, 0)),
    ]

    # advisory cost estimate for the XLA scheduler
    rows = B * T
    mm_flops = 2 * rows * D * (3 * D + D + 4 * D + 4 * D)
    attn_flops = 4 * B * N_HEADS * T * T * HEAD_DIM
    transcendentals = B * N_HEADS * T * T + rows * 4 * D
    bytes_accessed = (4 * 2 * rows * D
                      + 2 * (w_in.size + w_out.size + w1.size + w2.size)
                      + 4 * vec.size)
    cost = pl.CostEstimate(flops=int(mm_flops + attn_flops),
                           transcendentals=int(transcendentals),
                           bytes_accessed=int(bytes_accessed))

    out2d = pl.pallas_call(
        kernel,
        out_shape=jax.ShapeDtypeStruct((B * T, D), jnp.float32),
        grid_spec=pltpu.PrefetchScalarGridSpec(
            num_scalar_prefetch=0,
            grid=grid,
            in_specs=in_specs,
            out_specs=pl.BlockSpec((rows_blk, D), lambda i: (i, 0)),
            scratch_shapes=[],
        ),
        compiler_params=pltpu.CompilerParams(
            dimension_semantics=("parallel",),
            # explicit limit: safe on v5e (16MiB default), v6e (32MiB), v7x (64MiB phys)
            vmem_limit_bytes=32 * 1024 * 1024,
        ),
        cost_estimate=cost,
    )(x2d, w_in, w_out, w1, w2, vec)
    return out2d.reshape(B, T, D)


def make_params(key):
    ks = jax.random.split(key, 6)
    s = 0.02
    return {
        # MultiheadAttention in_proj (stored transposed: (D, 3D)) and out_proj
        "w_in": jax.random.normal(ks[0], (D_MODEL, 3 * D_MODEL), jnp.float32) * s,
        "b_in": jax.random.normal(ks[1], (1, 3 * D_MODEL), jnp.float32) * s,
        "w_out": jax.random.normal(ks[2], (D_MODEL, D_MODEL), jnp.float32) * s,
        "b_out": jax.random.normal(ks[3], (1, D_MODEL), jnp.float32) * s,
        "ln1_g": jnp.ones((1, D_MODEL), jnp.float32),
        "ln1_b": jnp.zeros((1, D_MODEL), jnp.float32),
        # FeedForward: Linear(D, 4D) -> GELU -> Linear(4D, D)
        "w1": jax.random.normal(ks[4], (D_MODEL, 4 * D_MODEL), jnp.float32) * s,
        "b1": jnp.zeros((1, 4 * D_MODEL), jnp.float32),
        "w2": jax.random.normal(ks[5], (4 * D_MODEL, D_MODEL), jnp.float32) * s,
        "b2": jnp.zeros((1, D_MODEL), jnp.float32),
        "ln2_g": jnp.ones((1, D_MODEL), jnp.float32),
        "ln2_b": jnp.zeros((1, D_MODEL), jnp.float32),
    }


def reference(x, p):
    # pure-JAX reference mirroring PyTorch eval-mode semantics (f32 throughout)
    B, T, D = x.shape
    hp = lax.Precision.HIGHEST
    qkv = jnp.einsum("btd,de->bte", x, p["w_in"], precision=hp) + p["b_in"][0]
    q, k, v = jnp.split(qkv, 3, axis=-1)
    q = q.reshape(B, T, N_HEADS, HEAD_DIM)
    k = k.reshape(B, T, N_HEADS, HEAD_DIM)
    v = v.reshape(B, T, N_HEADS, HEAD_DIM)
    s = jnp.einsum("bthd,bshd->bhts", q, k, precision=hp) / (HEAD_DIM ** 0.5)
    causal = jnp.tril(jnp.ones((T, T), bool))
    s = jnp.where(causal[None, None], s, -1e30)
    pattn = jax.nn.softmax(s, axis=-1)
    o = jnp.einsum("bhts,bshd->bthd", pattn, v, precision=hp).reshape(B, T, D)
    o = jnp.einsum("btd,de->bte", o, p["w_out"], precision=hp) + p["b_out"][0]

    def ln(y, g, b):
        mu = jnp.mean(y, -1, keepdims=True)
        var = jnp.mean((y - mu) ** 2, -1, keepdims=True)
        return (y - mu) * lax.rsqrt(var + LN_EPS) * g[0] + b[0]

    x1 = ln(x + o, p["ln1_g"], p["ln1_b"])
    h = jax.nn.gelu(jnp.einsum("btd,de->bte", x1, p["w1"], precision=hp) + p["b1"][0],
                    approximate=False)
    h = jnp.einsum("bte,ed->btd", h, p["w2"], precision=hp) + p["b2"][0]
    return ln(x1 + h, p["ln2_g"], p["ln2_b"])


if __name__ == "__main__":
    key = jax.random.PRNGKey(0)
    kx, kp = jax.random.split(key)
    B, T = 2, 8
    x = jax.random.normal(kx, (B, T, D_MODEL), jnp.float32)
    params = make_params(kp)

    out = transformer_block(x, params)
    out = jax.block_until_ready(out)

    ref = reference(x, params)
    assert out.shape == (B, T, D_MODEL)
    assert jnp.allclose(out, ref, atol=1e-2, rtol=1e-2), "mismatch vs reference"

    print("KERNEL_OK")
</pallas_src>

<mosaic_0001>
module attributes {stable_mosaic.version = 11 : i64} {
  func.func @_transformer_block_kernel(%arg0: i32, %arg1: memref<8x32xf32, #tpu.memory_space<vmem>>, %arg2: memref<32x96xbf16, #tpu.memory_space<vmem>>, %arg3: memref<32x32xbf16, #tpu.memory_space<vmem>>, %arg4: memref<32x128xbf16, #tpu.memory_space<vmem>>, %arg5: memref<128x32xbf16, #tpu.memory_space<vmem>>, %arg6: memref<8x128xf32, #tpu.memory_space<vmem>>, %arg7: memref<8x32xf32, #tpu.memory_space<vmem>>) attributes {dimension_semantics = [#tpu.dimension_semantics<parallel>], iteration_bounds = array<i64: 2>, scalar_prefetch = 0 : i64, scratch_operands = 0 : i64, tpu.core_type = #tpu.core_type<tc>, window_params = [{transform_indices = @transform_0, window_bounds = array<i64: 8, 32>}, {pipeline_mode = #tpu.pipeline_mode<synchronous>, transform_indices = @transform_1, window_bounds = array<i64: 32, 96>}, {pipeline_mode = #tpu.pipeline_mode<synchronous>, transform_indices = @transform_2, window_bounds = array<i64: 32, 32>}, {pipeline_mode = #tpu.pipeline_mode<synchronous>, transform_indices = @transform_3, window_bounds = array<i64: 32, 128>}, {pipeline_mode = #tpu.pipeline_mode<synchronous>, transform_indices = @transform_4, window_bounds = array<i64: 128, 32>}, {pipeline_mode = #tpu.pipeline_mode<synchronous>, transform_indices = @transform_5, window_bounds = array<i64: 8, 128>}, {transform_indices = @transform_6, window_bounds = array<i64: 8, 32>}]} {
    %c0 = arith.constant 0 : index
    %c0_0 = arith.constant 0 : index
    %0 = vector.load %arg6[%c0, %c0_0] : memref<8x128xf32, #tpu.memory_space<vmem>>, vector<1x96xf32>
    %c1 = arith.constant 1 : index
    %c0_1 = arith.constant 0 : index
    %1 = vector.load %arg6[%c1, %c0_1] : memref<8x128xf32, #tpu.memory_space<vmem>>, vector<1x128xf32>
    %c2 = arith.constant 2 : index
    %c0_2 = arith.constant 0 : index
    %2 = vector.load %arg6[%c2, %c0_2] : memref<8x128xf32, #tpu.memory_space<vmem>>, vector<1x32xf32>
    %c3 = arith.constant 3 : index
    %c0_3 = arith.constant 0 : index
    %3 = vector.load %arg6[%c3, %c0_3] : memref<8x128xf32, #tpu.memory_space<vmem>>, vector<1x32xf32>
    %c4 = arith.constant 4 : index
    %c0_4 = arith.constant 0 : index
    %4 = vector.load %arg6[%c4, %c0_4] : memref<8x128xf32, #tpu.memory_space<vmem>>, vector<1x32xf32>
    %c5 = arith.constant 5 : index
    %c0_5 = arith.constant 0 : index
    %5 = vector.load %arg6[%c5, %c0_5] : memref<8x128xf32, #tpu.memory_space<vmem>>, vector<1x32xf32>
    %c6 = arith.constant 6 : index
    %c0_6 = arith.constant 0 : index
    %6 = vector.load %arg6[%c6, %c0_6] : memref<8x128xf32, #tpu.memory_space<vmem>>, vector<1x32xf32>
    %c7 = arith.constant 7 : index
    %c0_7 = arith.constant 0 : index
    %7 = vector.load %arg6[%c7, %c0_7] : memref<8x128xf32, #tpu.memory_space<vmem>>, vector<1x32xf32>
    %c0_8 = arith.constant 0 : index
    %c0_9 = arith.constant 0 : index
    %8 = vector.load %arg1[%c0_8, %c0_9] : memref<8x32xf32, #tpu.memory_space<vmem>>, vector<8x32xf32>
    %9 = arith.truncf %8 : vector<8x32xf32> to vector<8x32xbf16>
    %c0_10 = arith.constant 0 : index
    %c0_11 = arith.constant 0 : index
    %10 = vector.load %arg2[%c0_10, %c0_11] : memref<32x96xbf16, #tpu.memory_space<vmem>>, vector<32x96xbf16>
    %cst = arith.constant dense<0.000000e+00> : vector<8x96xf32>
    %11 = tpu.matmul %9, %10, %cst {dimension_numbers = #tpu.dot_dimension_numbers<[1], [0], [0], [1], [0, 0, 1, 1], [], []>} : vector<8x32xbf16>, vector<32x96xbf16>, vector<8x96xf32> -> vector<8x96xf32>
    %12 = vector.broadcast %0 : vector<1x96xf32> to vector<8x96xf32>
    %13 = arith.addf %11, %12 : vector<8x96xf32>
    %14 = tpu.iota {dimensions = array<i32: 0>} : vector<8x8xi32>
    %15 = tpu.iota {dimensions = array<i32: 1>} : vector<8x8xi32>
    %16 = arith.cmpi sge, %14, %15 : vector<8x8xi32>
    %cst_12 = arith.constant 0.000000e+00 : f32
    %cst_13 = arith.constant -1.000000e+30 : f32
    %17 = vector.broadcast %cst_12 : f32 to vector<8x8xf32>
    %18 = vector.broadcast %cst_13 : f32 to vector<8x8xf32>
    %19 = arith.select %16, %17, %18 : vector<8x8xi1>, vector<8x8xf32>
    %20 = vector.shape_cast %19 : vector<8x8xf32> to vector<1x8x8xf32>
    %21 = vector.extract_strided_slice %13 {offsets = [0, 0], sizes = [8, 8], strides = [1, 1]} : vector<8x96xf32> to vector<8x8xf32>
    %22 = arith.truncf %21 : vector<8x8xf32> to vector<8x8xbf16>
    %23 = vector.shape_cast %22 : vector<8x8xbf16> to vector<1x8x8xbf16>
    %24 = vector.extract_strided_slice %13 {offsets = [0, 32], sizes = [8, 8], strides = [1, 1]} : vector<8x96xf32> to vector<8x8xf32>
    %25 = arith.truncf %24 : vector<8x8xf32> to vector<8x8xbf16>
    %26 = vector.shape_cast %25 : vector<8x8xbf16> to vector<1x8x8xbf16>
    %27 = vector.extract_strided_slice %13 {offsets = [0, 64], sizes = [8, 8], strides = [1, 1]} : vector<8x96xf32> to vector<8x8xf32>
    %28 = arith.truncf %27 : vector<8x8xf32> to vector<8x8xbf16>
    %29 = vector.shape_cast %28 : vector<8x8xbf16> to vector<1x8x8xbf16>
    "tpu.trace_start"() <{level = 10 : i32, message = "btd,bsd->bts"}> : () -> ()
    %cst_14 = arith.constant dense<0.000000e+00> : vector<1x8x8xf32>
    %30 = tpu.matmul %23, %26, %cst_14 {dimension_numbers = #tpu.dot_dimension_numbers<[2], [2], [1], [1], [0, 0, 0, 1, 1, 1], [0], [0]>} : vector<1x8x8xbf16>, vector<1x8x8xbf16>, vector<1x8x8xf32> -> vector<1x8x8xf32>
    "tpu.trace_stop"() : () -> ()
    %cst_15 = arith.constant 0.353553385 : f32
    %31 = vector.broadcast %cst_15 : f32 to vector<1x8x8xf32>
    %32 = arith.mulf %30, %31 : vector<1x8x8xf32>
    %33 = arith.addf %32, %20 : vector<1x8x8xf32>
    %cst_16 = arith.constant dense<0xFF800000> : vector<1x8xf32>
    %34 = vector.multi_reduction <maximumf>, %33, %cst_16 [2] : vector<1x8x8xf32> to vector<1x8xf32>
    %35 = vector.shape_cast %34 : vector<1x8xf32> to vector<1x8x1xf32>
    %36 = vector.broadcast %35 : vector<1x8x1xf32> to vector<1x8x8xf32>
    %37 = arith.subf %33, %36 : vector<1x8x8xf32>
    %38 = math.exp %37 : vector<1x8x8xf32>
    %cst_17 = arith.constant dense<0.000000e+00> : vector<1x8xf32>
    %39 = vector.multi_reduction <add>, %38, %cst_17 [2] : vector<1x8x8xf32> to vector<1x8xf32>
    %40 = vector.shape_cast %39 : vector<1x8xf32> to vector<1x8x1xf32>
    %41 = tpu.reciprocal %40 {approx = true} : vector<1x8x1xf32> -> vector<1x8x1xf32>
    %42 = vector.broadcast %41 : vector<1x8x1xf32> to vector<1x8x8xf32>
    %43 = arith.mulf %38, %42 : vector<1x8x8xf32>
    %44 = arith.truncf %43 : vector<1x8x8xf32> to vector<1x8x8xbf16>
    "tpu.trace_start"() <{level = 10 : i32, message = "bts,bsd->btd"}> : () -> ()
    %cst_18 = arith.constant dense<0.000000e+00> : vector<1x8x8xf32>
    %45 = tpu.matmul %44, %29, %cst_18 {dimension_numbers = #tpu.dot_dimension_numbers<[2], [1], [1], [2], [0, 0, 0, 1, 1, 2], [0], [0]>} : vector<1x8x8xbf16>, vector<1x8x8xbf16>, vector<1x8x8xf32> -> vector<1x8x8xf32>
    "tpu.trace_stop"() : () -> ()
    %46 = vector.shape_cast %45 : vector<1x8x8xf32> to vector<8x8xf32>
    %47 = vector.extract_strided_slice %13 {offsets = [0, 8], sizes = [8, 8], strides = [1, 1]} : vector<8x96xf32> to vector<8x8xf32>
    %48 = arith.truncf %47 : vector<8x8xf32> to vector<8x8xbf16>
    %49 = vector.shape_cast %48 : vector<8x8xbf16> to vector<1x8x8xbf16>
    %50 = vector.extract_strided_slice %13 {offsets = [0, 40], sizes = [8, 8], strides = [1, 1]} : vector<8x96xf32> to vector<8x8xf32>
    %51 = arith.truncf %50 : vector<8x8xf32> to vector<8x8xbf16>
    %52 = vector.shape_cast %51 : vector<8x8xbf16> to vector<1x8x8xbf16>
    %53 = vector.extract_strided_slice %13 {offsets = [0, 72], sizes = [8, 8], strides = [1, 1]} : vector<8x96xf32> to vector<8x8xf32>
    %54 = arith.truncf %53 : vector<8x8xf32> to vector<8x8xbf16>
    %55 = vector.shape_cast %54 : vector<8x8xbf16> to vector<1x8x8xbf16>
    "tpu.trace_start"() <{level = 10 : i32, message = "btd,bsd->bts"}> : () -> ()
    %cst_19 = arith.constant dense<0.000000e+00> : vector<1x8x8xf32>
    %56 = tpu.matmul %49, %52, %cst_19 {dimension_numbers = #tpu.dot_dimension_numbers<[2], [2], [1], [1], [0, 0, 0, 1, 1, 1], [0], [0]>} : vector<1x8x8xbf16>, vector<1x8x8xbf16>, vector<1x8x8xf32> -> vector<1x8x8xf32>
    "tpu.trace_stop"() : () -> ()
    %cst_20 = arith.constant 0.353553385 : f32
    %57 = vector.broadcast %cst_20 : f32 to vector<1x8x8xf32>
    %58 = arith.mulf %56, %57 : vector<1x8x8xf32>
    %59 = arith.addf %58, %20 : vector<1x8x8xf32>
    %cst_21 = arith.constant dense<0xFF800000> : vector<1x8xf32>
    %60 = vector.multi_reduction <maximumf>, %59, %cst_21 [2] : vector<1x8x8xf32> to vector<1x8xf32>
    %61 = vector.shape_cast %60 : vector<1x8xf32> to vector<1x8x1xf32>
    %62 = vector.broadcast %61 : vector<1x8x1xf32> to vector<1x8x8xf32>
    %63 = arith.subf %59, %62 : vector<1x8x8xf32>
    %64 = math.exp %63 : vector<1x8x8xf32>
    %cst_22 = arith.constant dense<0.000000e+00> : vector<1x8xf32>
    %65 = vector.multi_reduction <add>, %64, %cst_22 [2] : vector<1x8x8xf32> to vector<1x8xf32>
    %66 = vector.shape_cast %65 : vector<1x8xf32> to vector<1x8x1xf32>
    %67 = tpu.reciprocal %66 {approx = true} : vector<1x8x1xf32> -> vector<1x8x1xf32>
    %68 = vector.broadcast %67 : vector<1x8x1xf32> to vector<1x8x8xf32>
    %69 = arith.mulf %64, %68 : vector<1x8x8xf32>
    %70 = arith.truncf %69 : vector<1x8x8xf32> to vector<1x8x8xbf16>
    "tpu.trace_start"() <{level = 10 : i32, message = "bts,bsd->btd"}> : () -> ()
    %cst_23 = arith.constant dense<0.000000e+00> : vector<1x8x8xf32>
    %71 = tpu.matmul %70, %55, %cst_23 {dimension_numbers = #tpu.dot_dimension_numbers<[2], [1], [1], [2], [0, 0, 0, 1, 1, 2], [0], [0]>} : vector<1x8x8xbf16>, vector<1x8x8xbf16>, vector<1x8x8xf32> -> vector<1x8x8xf32>
    "tpu.trace_stop"() : () -> ()
    %72 = vector.shape_cast %71 : vector<1x8x8xf32> to vector<8x8xf32>
    %73 = vector.extract_strided_slice %13 {offsets = [0, 16], sizes = [8, 8], strides = [1, 1]} : vector<8x96xf32> to vector<8x8xf32>
    %74 = arith.truncf %73 : vector<8x8xf32> to vector<8x8xbf16>
    %75 = vector.shape_cast %74 : vector<8x8xbf16> to vector<1x8x8xbf16>
    %76 = vector.extract_strided_slice %13 {offsets = [0, 48], sizes = [8, 8], strides = [1, 1]} : vector<8x96xf32> to vector<8x8xf32>
    %77 = arith.truncf %76 : vector<8x8xf32> to vector<8x8xbf16>
    %78 = vector.shape_cast %77 : vector<8x8xbf16> to vector<1x8x8xbf16>
    %79 = vector.extract_strided_slice %13 {offsets = [0, 80], sizes = [8, 8], strides = [1, 1]} : vector<8x96xf32> to vector<8x8xf32>
    %80 = arith.truncf %79 : vector<8x8xf32> to vector<8x8xbf16>
    %81 = vector.shape_cast %80 : vector<8x8xbf16> to vector<1x8x8xbf16>
    "tpu.trace_start"() <{level = 10 : i32, message = "btd,bsd->bts"}> : () -> ()
    %cst_24 = arith.constant dense<0.000000e+00> : vector<1x8x8xf32>
    %82 = tpu.matmul %75, %78, %cst_24 {dimension_numbers = #tpu.dot_dimension_numbers<[2], [2], [1], [1], [0, 0, 0, 1, 1, 1], [0], [0]>} : vector<1x8x8xbf16>, vector<1x8x8xbf16>, vector<1x8x8xf32> -> vector<1x8x8xf32>
    "tpu.trace_stop"() : () -> ()
    %cst_25 = arith.constant 0.353553385 : f32
    %83 = vector.broadcast %cst_25 : f32 to vector<1x8x8xf32>
    %84 = arith.mulf %82, %83 : vector<1x8x8xf32>
    %85 = arith.addf %84, %20 : vector<1x8x8xf32>
    %cst_26 = arith.constant dense<0xFF800000> : vector<1x8xf32>
    %86 = vector.multi_reduction <maximumf>, %85, %cst_26 [2] : vector<1x8x8xf32> to vector<1x8xf32>
    %87 = vector.shape_cast %86 : vector<1x8xf32> to vector<1x8x1xf32>
    %88 = vector.broadcast %87 : vector<1x8x1xf32> to vector<1x8x8xf32>
    %89 = arith.subf %85, %88 : vector<1x8x8xf32>
    %90 = math.exp %89 : vector<1x8x8xf32>
    %cst_27 = arith.constant dense<0.000000e+00> : vector<1x8xf32>
    %91 = vector.multi_reduction <add>, %90, %cst_27 [2] : vector<1x8x8xf32> to vector<1x8xf32>
    %92 = vector.shape_cast %91 : vector<1x8xf32> to vector<1x8x1xf32>
    %93 = tpu.reciprocal %92 {approx = true} : vector<1x8x1xf32> -> vector<1x8x1xf32>
    %94 = vector.broadcast %93 : vector<1x8x1xf32> to vector<1x8x8xf32>
    %95 = arith.mulf %90, %94 : vector<1x8x8xf32>
    %96 = arith.truncf %95 : vector<1x8x8xf32> to vector<1x8x8xbf16>
    "tpu.trace_start"() <{level = 10 : i32, message = "bts,bsd->btd"}> : () -> ()
    %cst_28 = arith.constant dense<0.000000e+00> : vector<1x8x8xf32>
    %97 = tpu.matmul %96, %81, %cst_28 {dimension_numbers = #tpu.dot_dimension_numbers<[2], [1], [1], [2], [0, 0, 0, 1, 1, 2], [0], [0]>} : vector<1x8x8xbf16>, vector<1x8x8xbf16>, vector<1x8x8xf32> -> vector<1x8x8xf32>
    "tpu.trace_stop"() : () -> ()
    %98 = vector.shape_cast %97 : vector<1x8x8xf32> to vector<8x8xf32>
    %99 = vector.extract_strided_slice %13 {offsets = [0, 24], sizes = [8, 8], strides = [1, 1]} : vector<8x96xf32> to vector<8x8xf32>
    %100 = arith.truncf %99 : vector<8x8xf32> to vector<8x8xbf16>
    %101 = vector.shape_cast %100 : vector<8x8xbf16> to vector<1x8x8xbf16>
    %102 = vector.extract_strided_slice %13 {offsets = [0, 56], sizes = [8, 8], strides = [1, 1]} : vector<8x96xf32> to vector<8x8xf32>
    %103 = arith.truncf %102 : vector<8x8xf32> to vector<8x8xbf16>
    %104 = vector.shape_cast %103 : vector<8x8xbf16> to vector<1x8x8xbf16>
    %105 = vector.extract_strided_slice %13 {offsets = [0, 88], sizes = [8, 8], strides = [1, 1]} : vector<8x96xf32> to vector<8x8xf32>
    %106 = arith.truncf %105 : vector<8x8xf32> to vector<8x8xbf16>
    %107 = vector.shape_cast %106 : vector<8x8xbf16> to vector<1x8x8xbf16>
    "tpu.trace_start"() <{level = 10 : i32, message = "btd,bsd->bts"}> : () -> ()
    %cst_29 = arith.constant dense<0.000000e+00> : vector<1x8x8xf32>
    %108 = tpu.matmul %101, %104, %cst_29 {dimension_numbers = #tpu.dot_dimension_numbers<[2], [2], [1], [1], [0, 0, 0, 1, 1, 1], [0], [0]>} : vector<1x8x8xbf16>, vector<1x8x8xbf16>, vector<1x8x8xf32> -> vector<1x8x8xf32>
    "tpu.trace_stop"() : () -> ()
    %cst_30 = arith.constant 0.353553385 : f32
    %109 = vector.broadcast %cst_30 : f32 to vector<1x8x8xf32>
    %110 = arith.mulf %108, %109 : vector<1x8x8xf32>
    %111 = arith.addf %110, %20 : vector<1x8x8xf32>
    %cst_31 = arith.constant dense<0xFF800000> : vector<1x8xf32>
    %112 = vector.multi_reduction <maximumf>, %111, %cst_31 [2] : vector<1x8x8xf32> to vector<1x8xf32>
    %113 = vector.shape_cast %112 : vector<1x8xf32> to vector<1x8x1xf32>
    %114 = vector.broadcast %113 : vector<1x8x1xf32> to vector<1x8x8xf32>
    %115 = arith.subf %111, %114 : vector<1x8x8xf32>
    %116 = math.exp %115 : vector<1x8x8xf32>
    %cst_32 = arith.constant dense<0.000000e+00> : vector<1x8xf32>
    %117 = vector.multi_reduction <add>, %116, %cst_32 [2] : vector<1x8x8xf32> to vector<1x8xf32>
    %118 = vector.shape_cast %117 : vector<1x8xf32> to vector<1x8x1xf32>
    %119 = tpu.reciprocal %118 {approx = true} : vector<1x8x1xf32> -> vector<1x8x1xf32>
    %120 = vector.broadcast %119 : vector<1x8x1xf32> to vector<1x8x8xf32>
    %121 = arith.mulf %116, %120 : vector<1x8x8xf32>
    %122 = arith.truncf %121 : vector<1x8x8xf32> to vector<1x8x8xbf16>
    "tpu.trace_start"() <{level = 10 : i32, message = "bts,bsd->btd"}> : () -> ()
    %cst_33 = arith.constant dense<0.000000e+00> : vector<1x8x8xf32>
    %123 = tpu.matmul %122, %107, %cst_33 {dimension_numbers = #tpu.dot_dimension_numbers<[2], [1], [1], [2], [0, 0, 0, 1, 1, 2], [0], [0]>} : vector<1x8x8xbf16>, vector<1x8x8xbf16>, vector<1x8x8xf32> -> vector<1x8x8xf32>
    "tpu.trace_stop"() : () -> ()
    %124 = vector.shape_cast %123 : vector<1x8x8xf32> to vector<8x8xf32>
    %125 = tpu.concatenate %46, %72, %98, %124 in 1 : vector<8x8xf32>, vector<8x8xf32>, vector<8x8xf32>, vector<8x8xf32> -> vector<8x32xf32>
    %126 = arith.truncf %125 : vector<8x32xf32> to vector<8x32xbf16>
    %c0_34 = arith.constant 0 : index
    %c0_35 = arith.constant 0 : index
    %127 = vector.load %arg3[%c0_34, %c0_35] : memref<32x32xbf16, #tpu.memory_space<vmem>>, vector<32x32xbf16>
    %cst_36 = arith.constant dense<0.000000e+00> : vector<8x32xf32>
    %128 = tpu.matmul %126, %127, %cst_36 {dimension_numbers = #tpu.dot_dimension_numbers<[1], [0], [0], [1], [0, 0, 1, 1], [], []>} : vector<8x32xbf16>, vector<32x32xbf16>, vector<8x32xf32> -> vector<8x32xf32>
    %129 = vector.broadcast %2 : vector<1x32xf32> to vector<8x32xf32>
    %130 = arith.addf %128, %129 : vector<8x32xf32>
    %131 = arith.addf %8, %130 : vector<8x32xf32>
    %cst_37 = arith.constant dense<0.000000e+00> : vector<8xf32>
    %132 = vector.multi_reduction <add>, %131, %cst_37 [1] : vector<8x32xf32> to vector<8xf32>
    %133 = vector.shape_cast %132 : vector<8xf32> to vector<8x1xf32>
    %cst_38 = arith.constant 3.200000e+01 : f32
    %134 = vector.broadcast %cst_38 : f32 to vector<8x1xf32>
    %135 = arith.divf %133, %134 : vector<8x1xf32>
    %136 = vector.broadcast %135 : vector<8x1xf32> to vector<8x32xf32>
    %137 = arith.subf %131, %136 : vector<8x32xf32>
    %138 = arith.mulf %137, %137 : vector<8x32xf32>
    %cst_39 = arith.constant dense<0.000000e+00> : vector<8xf32>
    %139 = vector.multi_reduction <add>, %138, %cst_39 [1] : vector<8x32xf32> to vector<8xf32>
    %140 = vector.shape_cast %139 : vector<8xf32> to vector<8x1xf32>
    %cst_40 = arith.constant 3.200000e+01 : f32
    %141 = vector.broadcast %cst_40 : f32 to vector<8x1xf32>
    %142 = arith.divf %140, %141 : vector<8x1xf32>
    %143 = vector.broadcast %135 : vector<8x1xf32> to vector<8x32xf32>
    %144 = arith.subf %131, %143 : vector<8x32xf32>
    %cst_41 = arith.constant 9.99999974E-6 : f32
    %145 = vector.broadcast %cst_41 : f32 to vector<8x1xf32>
    %146 = arith.addf %142, %145 : vector<8x1xf32>
    %147 = math.rsqrt %146 : vector<8x1xf32>
    %148 = vector.broadcast %147 : vector<8x1xf32> to vector<8x32xf32>
    %149 = arith.mulf %144, %148 : vector<8x32xf32>
    %150 = vector.broadcast %3 : vector<1x32xf32> to vector<8x32xf32>
    %151 = arith.mulf %149, %150 : vector<8x32xf32>
    %152 = vector.broadcast %4 : vector<1x32xf32> to vector<8x32xf32>
    %153 = arith.addf %151, %152 : vector<8x32xf32>
    %154 = arith.truncf %153 : vector<8x32xf32> to vector<8x32xbf16>
    %c0_42 = arith.constant 0 : index
    %c0_43 = arith.constant 0 : index
    %155 = vector.load %arg4[%c0_42, %c0_43] : memref<32x128xbf16, #tpu.memory_space<vmem>>, vector<32x128xbf16>
    %cst_44 = arith.constant dense<0.000000e+00> : vector<8x128xf32>
    %156 = tpu.matmul %154, %155, %cst_44 {dimension_numbers = #tpu.dot_dimension_numbers<[1], [0], [0], [1], [0, 0, 1, 1], [], []>} : vector<8x32xbf16>, vector<32x128xbf16>, vector<8x128xf32> -> vector<8x128xf32>
    %157 = vector.broadcast %1 : vector<1x128xf32> to vector<8x128xf32>
    %158 = arith.addf %156, %157 : vector<8x128xf32>
    %cst_45 = arith.constant 5.000000e-01 : f32
    %159 = vector.broadcast %cst_45 : f32 to vector<8x128xf32>
    %160 = arith.mulf %159, %158 : vector<8x128xf32>
    %cst_46 = arith.constant 0.707106769 : f32
    %161 = vector.broadcast %cst_46 : f32 to vector<8x128xf32>
    %162 = arith.mulf %158, %161 : vector<8x128xf32>
    %163 = math.erf %162 : vector<8x128xf32>
    %cst_47 = arith.constant 1.000000e+00 : f32
    %164 = vector.broadcast %cst_47 : f32 to vector<8x128xf32>
    %165 = arith.addf %164, %163 : vector<8x128xf32>
    %166 = arith.mulf %160, %165 : vector<8x128xf32>
    %167 = arith.truncf %166 : vector<8x128xf32> to vector<8x128xbf16>
    %c0_48 = arith.constant 0 : index
    %c0_49 = arith.constant 0 : index
    %168 = vector.load %arg5[%c0_48, %c0_49] : memref<128x32xbf16, #tpu.memory_space<vmem>>, vector<128x32xbf16>
    %cst_50 = arith.constant dense<0.000000e+00> : vector<8x32xf32>
    %169 = tpu.matmul %167, %168, %cst_50 {dimension_numbers = #tpu.dot_dimension_numbers<[1], [0], [0], [1], [0, 0, 1, 1], [], []>} : vector<8x128xbf16>, vector<128x32xbf16>, vector<8x32xf32> -> vector<8x32xf32>
    %170 = vector.broadcast %5 : vector<1x32xf32> to vector<8x32xf32>
    %171 = arith.addf %169, %170 : vector<8x32xf32>
    %172 = arith.addf %153, %171 : vector<8x32xf32>
    %cst_51 = arith.constant dense<0.000000e+00> : vector<8xf32>
    %173 = vector.multi_reduction <add>, %172, %cst_51 [1] : vector<8x32xf32> to vector<8xf32>
    %174 = vector.shape_cast %173 : vector<8xf32> to vector<8x1xf32>
    %cst_52 = arith.constant 3.200000e+01 : f32
    %175 = vector.broadcast %cst_52 : f32 to vector<8x1xf32>
    %176 = arith.divf %174, %175 : vector<8x1xf32>
    %177 = vector.broadcast %176 : vector<8x1xf32> to vector<8x32xf32>
    %178 = arith.subf %172, %177 : vector<8x32xf32>
    %179 = arith.mulf %178, %178 : vector<8x32xf32>
    %cst_53 = arith.constant dense<0.000000e+00> : vector<8xf32>
    %180 = vector.multi_reduction <add>, %179, %cst_53 [1] : vector<8x32xf32> to vector<8xf32>
    %181 = vector.shape_cast %180 : vector<8xf32> to vector<8x1xf32>
    %cst_54 = arith.constant 3.200000e+01 : f32
    %182 = vector.broadcast %cst_54 : f32 to vector<8x1xf32>
    %183 = arith.divf %181, %182 : vector<8x1xf32>
    %184 = vector.broadcast %176 : vector<8x1xf32> to vector<8x32xf32>
    %185 = arith.subf %172, %184 : vector<8x32xf32>
    %cst_55 = arith.constant 9.99999974E-6 : f32
    %186 = vector.broadcast %cst_55 : f32 to vector<8x1xf32>
    %187 = arith.addf %183, %186 : vector<8x1xf32>
    %188 = math.rsqrt %187 : vector<8x1xf32>
    %189 = vector.broadcast %188 : vector<8x1xf32> to vector<8x32xf32>
    %190 = arith.mulf %185, %189 : vector<8x32xf32>
    %191 = vector.broadcast %6 : vector<1x32xf32> to vector<8x32xf32>
    %192 = arith.mulf %190, %191 : vector<8x32xf32>
    %193 = vector.broadcast %7 : vector<1x32xf32> to vector<8x32xf32>
    %194 = arith.addf %192, %193 : vector<8x32xf32>
    %c0_56 = arith.constant 0 : index
    %c0_57 = arith.constant 0 : index
    %195 = vector.load %arg7[%c0_56, %c0_57] : memref<8x32xf32, #tpu.memory_space<vmem>>, vector<8x32xf32>
    tpu.vector_store %arg7[%c0_56, %c0_57], %194 {strides = array<i32>} : memref<8x32xf32, #tpu.memory_space<vmem>>, vector<8x32xf32>,
    return
  }
  func.func @transform_0(%arg0: i32) -> (i32, i32) {
    %c0_i32 = arith.constant 0 : i32
    %c0_i32_0 = arith.constant 0 : i32
    return %arg0, %c0_i32 : i32, i32
  }
  func.func @transform_1(%arg0: i32) -> (i32, i32) {
    %c0_i32 = arith.constant 0 : i32
    %c0_i32_0 = arith.constant 0 : i32
    %c0_i32_1 = arith.constant 0 : i32
    return %c0_i32, %c0_i32_0 : i32, i32
  }
  func.func @transform_2(%arg0: i32) -> (i32, i32) {
    %c0_i32 = arith.constant 0 : i32
    %c0_i32_0 = arith.constant 0 : i32
    %c0_i32_1 = arith.constant 0 : i32
    return %c0_i32, %c0_i32_0 : i32, i32
  }
  func.func @transform_3(%arg0: i32) -> (i32, i32) {
    %c0_i32 = arith.constant 0 : i32
    %c0_i32_0 = arith.constant 0 : i32
    %c0_i32_1 = arith.constant 0 : i32
    return %c0_i32, %c0_i32_0 : i32, i32
  }
  func.func @transform_4(%arg0: i32) -> (i32, i32) {
    %c0_i32 = arith.constant 0 : i32
    %c0_i32_0 = arith.constant 0 : i32
    %c0_i32_1 = arith.constant 0 : i32
    return %c0_i32, %c0_i32_0 : i32, i32
  }
  func.func @transform_5(%arg0: i32) -> (i32, i32) {
    %c0_i32 = arith.constant 0 : i32
    %c0_i32_0 = arith.constant 0 : i32
    %c0_i32_1 = arith.constant 0 : i32
    return %c0_i32, %c0_i32_0 : i32, i32
  }
  func.func @transform_6(%arg0: i32) -> (i32, i32) {
    %c0_i32 = arith.constant 0 : i32
    %c0_i32_0 = arith.constant 0 : i32
    return %arg0, %c0_i32 : i32, i32
  }
}

</mosaic_0001>

<llo_original>
// kernel: tpu_custom_call.1
$region0: #{tpu_custom_call.1}
  #allocation0 [shape = 'u32[]', space=smem, size = 0x4, offset = 0x4, fixed_abs, tag = 'smem constant byte address 0x4 - core index']
  #allocation1 [shape = 'u32[72,128]{1,0:T(1,128)}', space=vmem, size = 0x9000, scoped, tag = 'internal scratch']
  %s0 = inlined_call_operand.vmem [shape: f32[16,32], index: 0, kind: input, shape index: {}]
  %s1 = inlined_call_operand.vmem [shape: bf16[32,96], index: 1, kind: input, shape index: {}]
  %s2 = inlined_call_operand.vmem [shape: bf16[32,32], index: 2, kind: input, shape index: {}]
  %s3 = inlined_call_operand.vmem [shape: bf16[32,128], index: 3, kind: input, shape index: {}]
  %s4 = inlined_call_operand.vmem [shape: bf16[128,32], index: 4, kind: input, shape index: {}]
  %s5 = inlined_call_operand.vmem [shape: f32[8,128], index: 5, kind: input, shape index: {}]
  %s6 = inlined_call_operand.hbm [shape: f32[16,32], index: 6, kind: output, shape index: {}]
  %s7 = sld [smem:[#allocation0]]
  $region57: #{tpu_custom_call.1} parent=0
    _
  %s9 = ssub.s32 1, %s7
  %s10 = scalar_select 0, %s9, %s7
  $region1: #{tpu_custom_call.1} parent=0
    #allocation2 [shape = 'u8[8192]{0}', space=vmem, size = 0x2000, scoped, tag = 'output window, operand 0']
    #allocation3 [shape = 's32[2]{0}', space=sflag, size = 0x8, scoped, tag = 'scoped memory for tpu_custom_call.1']
    %11 = vsyncpa [#allocation3], 0
    %s12 = scalar_lea.sflag [#allocation3], 1
    %13 = vsyncpa %s12, 0
    loop: start=0, step=1, limit=4
    $region2: #{tpu_custom_call.1} parent=1 // loop_pre_header
      _
    $region3: #{tpu_custom_call.1} parent=1 // loop_header
      %s15 = sphi 0, %s19
      %p16 = scmp.ge.s32.totalorder %s15, 4
      %s25 = sphi 0, %s27
      %s28 = sphi 0, %s25
      %s29 = sphi 0, %s28
      %s45 = sphi 0, %s29
      %s49 = sphi 0, %s49
      %s51 = sphi 0, %s49
      %s52 = sphi 0, %s51
      %s66 = sphi 0, %s52
      %s70 = sphi 0, %s70
      %s72 = sphi 0, %s70
      %s73 = sphi 0, %s72
      %s87 = sphi 0, %s73
      %s91 = sphi 0, %s91
      %s93 = sphi 0, %s91
      %s94 = sphi 0, %s93
      %s108 = sphi 0, %s94
      %s112 = sphi 0, %s112
      %s114 = sphi 0, %s112
      %s115 = sphi 0, %s114
      %s129 = sphi 0, %s115
      %s133 = sphi 0, %s133
      %s135 = sphi 0, %s133
      %s136 = sphi 0, %s135
      %s150 = sphi 0, %s136
      %s156 = sphi 0, %s158
      %s159 = sphi 0, %s156
      %s160 = sphi 0, %s159
      %s176 = sphi 0, %s160
    $region4: #{tpu_custom_call.1} parent=1 // loop_header_branch
      %18 = sbr.rel (%p16) target = $region8
    $region5: #{tpu_custom_call.1} parent=1 // loop_body
      %s20 = ssub.s32 %s15, 1
      %s21 = ssub.s32 %s15, 2
      %s22 = sadd.s32 %s15, 1
      %s23 = ssub.s32 %s15, %s22
      %p24 = scmp.eq.s32.totalorder %s23, 0
      %s26 = sadd.s32 %s25, 1
      %s27 = scalar_select %p24, %s25, %s26
      %p30 = pneg %p24
      %p31 = scmp.eq.s32.totalorder %s15, 1
      %p32 = por %p30, %p31
      %p33 = scmp.ne.s32.totalorder %s25, %s28
      %p34 = scmp.eq.s32.totalorder %s15, 0
      %p35 = por %p33, %p34
      %p36 = scmp.ne.s32.totalorder %s25, %s28
      %p37 = scmp.eq.s32.totalorder %s20, 1
      %p38 = por %p36, %p37
      %p39 = scmp.ne.s32.totalorder %s28, %s29
      %p40 = scmp.eq.s32.totalorder %s20, 0
      %p41 = por %p39, %p40
      %p42 = scmp.ne.s32.totalorder %s28, %s29
      %p43 = scmp.eq.s32.totalorder %s21, 1
      %p44 = por %p42, %p43
      %p46 = scmp.ne.s32.totalorder %s29, %s45
      %p47 = scmp.eq.s32.totalorder %s21, 0
      %p48 = por %p46, %p47
      %s50 = sadd.s32 %s49, 1
      %p53 = scmp.eq.s32.totalorder %s15, 1
      %p54 = scmp.ne.s32.totalorder %s49, %s51
      %p55 = scmp.eq.s32.totalorder %s15, 0
      %p56 = por %p54, %p55
      %p57 = scmp.ne.s32.totalorder %s49, %s51
      %p58 = scmp.eq.s32.totalorder %s20, 1
      %p59 = por %p57, %p58
      %p60 = scmp.ne.s32.totalorder %s51, %s52
      %p61 = scmp.eq.s32.totalorder %s20, 0
      %p62 = por %p60, %p61
      %p63 = scmp.ne.s32.totalorder %s51, %s52
      %p64 = scmp.eq.s32.totalorder %s21, 1
      %p65 = por %p63, %p64
      %p67 = scmp.ne.s32.totalorder %s52, %s66
      %p68 = scmp.eq.s32.totalorder %s21, 0
      %p69 = por %p67, %p68
      %s71 = sadd.s32 %s70, 1
      %p74 = scmp.eq.s32.totalorder %s15, 1
      %p75 = scmp.ne.s32.totalorder %s70, %s72
      %p76 = scmp.eq.s32.totalorder %s15, 0
      %p77 = por %p75, %p76
      %p78 = scmp.ne.s32.totalorder %s70, %s72
      %p79 = scmp.eq.s32.totalorder %s20, 1
      %p80 = por %p78, %p79
      %p81 = scmp.ne.s32.totalorder %s72, %s73
      %p82 = scmp.eq.s32.totalorder %s20, 0
      %p83 = por %p81, %p82
      %p84 = scmp.ne.s32.totalorder %s72, %s73
      %p85 = scmp.eq.s32.totalorder %s21, 1
      %p86 = por %p84, %p85
      %p88 = scmp.ne.s32.totalorder %s73, %s87
      %p89 = scmp.eq.s32.totalorder %s21, 0
      %p90 = por %p88, %p89
      %s92 = sadd.s32 %s91, 1
      %p95 = scmp.eq.s32.totalorder %s15, 1
      %p96 = scmp.ne.s32.totalorder %s91, %s93
      %p97 = scmp.eq.s32.totalorder %s15, 0
      %p98 = por %p96, %p97
      %p99 = scmp.ne.s32.totalorder %s91, %s93
      %p100 = scmp.eq.s32.totalorder %s20, 1
      %p101 = por %p99, %p100
      %p102 = scmp.ne.s32.totalorder %s93, %s94
      %p103 = scmp.eq.s32.totalorder %s20, 0
      %p104 = por %p102, %p103
      %p105 = scmp.ne.s32.totalorder %s93, %s94
      %p106 = scmp.eq.s32.totalorder %s21, 1
      %p107 = por %p105, %p106
      %p109 = scmp.ne.s32.totalorder %s94, %s108
      %p110 = scmp.eq.s32.totalorder %s21, 0
      %p111 = por %p109, %p110
      %s113 = sadd.s32 %s112, 1
      %p116 = scmp.eq.s32.totalorder %s15, 1
      %p117 = scmp.ne.s32.totalorder %s112, %s114
      %p118 = scmp.eq.s32.totalorder %s15, 0
      %p119 = por %p117, %p118
      %p120 = scmp.ne.s32.totalorder %s112, %s114
      %p121 = scmp.eq.s32.totalorder %s20, 1
      %p122 = por %p120, %p121
      %p123 = scmp.ne.s32.totalorder %s114, %s115
      %p124 = scmp.eq.s32.totalorder %s20, 0
      %p125 = por %p123, %p124
      %p126 = scmp.ne.s32.totalorder %s114, %s115
      %p127 = scmp.eq.s32.totalorder %s21, 1
      %p128 = por %p126, %p127
      %p130 = scmp.ne.s32.totalorder %s115, %s129
      %p131 = scmp.eq.s32.totalorder %s21, 0
      %p132 = por %p130, %p131
      %s134 = sadd.s32 %s133, 1
      %p137 = scmp.eq.s32.totalorder %s15, 1
      %p138 = scmp.ne.s32.totalorder %s133, %s135
      %p139 = scmp.eq.s32.totalorder %s15, 0
      %p140 = por %p138, %p139
      %p141 = scmp.ne.s32.totalorder %s133, %s135
      %p142 = scmp.eq.s32.totalorder %s20, 1
      %p143 = por %p141, %p142
      %p144 = scmp.ne.s32.totalorder %s135, %s136
      %p145 = scmp.eq.s32.totalorder %s20, 0
      %p146 = por %p144, %p145
      %p147 = scmp.ne.s32.totalorder %s135, %s136
      %p148 = scmp.eq.s32.totalorder %s21, 1
      %p149 = por %p147, %p148
      %p151 = scmp.ne.s32.totalorder %s136, %s150
      %p152 = scmp.eq.s32.totalorder %s21, 0
      %p153 = por %p151, %p152
      %s154 = ssub.s32 %s15, %s22
      %p155 = scmp.eq.s32.totalorder %s154, 0
      %s157 = sadd.s32 %s156, 1
      %s158 = scalar_select %p155, %s156, %s157
      %p161 = pneg %p155
      %p162 = scmp.eq.s32.totalorder %s15, 1
      %p163 = por %p161, %p162
      %p164 = scmp.ne.s32.totalorder %s156, %s159
      %p165 = scmp.eq.s32.totalorder %s15, 0
      %p166 = por %p164, %p165
      %p167 = scmp.ne.s32.totalorder %s156, %s159
      %p168 = scmp.eq.s32.totalorder %s20, 1
      %p169 = por %p167, %p168
      %p170 = scmp.ne.s32.totalorder %s159, %s160
      %p171 = scmp.eq.s32.totalorder %s20, 0
      %p172 = por %p170, %p171
      %p173 = scmp.ne.s32.totalorder %s159, %s160
      %p174 = scmp.eq.s32.totalorder %s21, 1
      %p175 = por %p173, %p174
      %p177 = scmp.ne.s32.totalorder %s160, %s176
      %p178 = scmp.eq.s32.totalorder %s21, 0
      %p179 = por %p177, %p178
      %p180 = scmp.le.s32.totalorder 1, %s15
      %p181 = scmp.lt.s32.totalorder %s15, 3
      %p182 = pnand %p180, %p181
      %p183 = pneg %p182
      // Predicated region
      $region9: #{tpu_custom_call.1} parent=5 // pred_check
        _
      $region10: #{tpu_custom_call.1} parent=5 // pred_check_branch
        %185 = sbr.rel (%p182) target = $region12
      $region11: #{tpu_custom_call.1} parent=5 // pred_region
        %s186 = ssub.s32 %s15, 1
        // Predicated region
        $region13: #{tpu_custom_call.1} parent=11 // pred_check
          %p187 = pneg %p62
        $region14: #{tpu_custom_call.1} parent=11 // pred_check_branch
          %189 = sbr.rel (%p187) target = $region16
        $region15: #{tpu_custom_call.1} parent=11 // pred_region
          _
        $region16: #{tpu_custom_call.1} parent=11 // pred_fallthru
          _
        // Predicated region
        $region17: #{tpu_custom_call.1} parent=11 // pred_check
          %p190 = pneg %p83
        $region18: #{tpu_custom_call.1} parent=11 // pred_check_branch
          %192 = sbr.rel (%p190) target = $region20
        $region19: #{tpu_custom_call.1} parent=11 // pred_region
          _
        $region20: #{tpu_custom_call.1} parent=11 // pred_fallthru
          _
        // Predicated region
        $region21: #{tpu_custom_call.1} parent=11 // pred_check
          %p193 = pneg %p104
        $region22: #{tpu_custom_call.1} parent=11 // pred_check_branch
          %195 = sbr.rel (%p193) target = $region24
        $region23: #{tpu_custom_call.1} parent=11 // pred_region
          _
        $region24: #{tpu_custom_call.1} parent=11 // pred_fallthru
          _
        // Predicated region
        $region25: #{tpu_custom_call.1} parent=11 // pred_check
          %p196 = pneg %p125
        $region26: #{tpu_custom_call.1} parent=11 // pred_check_branch
          %198 = sbr.rel (%p196) target = $region28
        $region27: #{tpu_custom_call.1} parent=11 // pred_region
          _
        $region28: #{tpu_custom_call.1} parent=11 // pred_fallthru
          _
        // Predicated region
        $region29: #{tpu_custom_call.1} parent=11 // pred_check
          %p199 = pneg %p146
        $region30: #{tpu_custom_call.1} parent=11 // pred_check_branch
          %201 = sbr.rel (%p199) target = $region32
        $region31: #{tpu_custom_call.1} parent=11 // pred_region
          _
        $region32: #{tpu_custom_call.1} parent=11 // pred_fallthru
          _
      $region12: #{tpu_custom_call.1} parent=5 // pred_fallthru
        _
      %p202 = scmp.lt.s32.totalorder %s15, 2
      // Predicated region
      $region33: #{tpu_custom_call.1} parent=5 // pred_check
        %p203 = pneg %p202
      $region34: #{tpu_custom_call.1} parent=5 // pred_check_branch
        %205 = sbr.rel (%p203) target = $region36
      $region35: #{tpu_custom_call.1} parent=5 // pred_region
        // Predicated region
        $region37: #{tpu_custom_call.1} parent=35 // pred_check
          %p206 = pneg %p35
        $region38: #{tpu_custom_call.1} parent=35 // pred_check_branch
          %208 = sbr.rel (%p206) target = $region40
        $region39: #{tpu_custom_call.1} parent=35 // pred_region
          %p209 = scmp.lt.s32.totalorder %s15, 1
          %s210 = scalar_select %p209, %s15, 1
          %s211 = smul.addr %s210, 8
          %s212 = scalar_lea.vmem %s0, %s211
        $region40: #{tpu_custom_call.1} parent=35 // pred_fallthru
          _
      $region36: #{tpu_custom_call.1} parent=5 // pred_fallthru
        _
      %p213 = scmp.le.s32.totalorder 1, %s15
      %p214 = scmp.lt.s32.totalorder %s15, 3
      %p215 = pnand %p213, %p214
      %p216 = pneg %p215
      // Predicated region
      $region41: #{tpu_custom_call.1} parent=5 // pred_check
        _
      $region42: #{tpu_custom_call.1} parent=5 // pred_check_branch
        %218 = sbr.rel (%p215) target = $region44
      $region43: #{tpu_custom_call.1} parent=5 // pred_region
        %s219 = ssub.s32 %s15, 1
        %p220 = scmp.lt.s32.totalorder %s20, 1
        %s221 = scalar_select %p220, %s20, 1
        %s222 = smul.addr %s221, 8
        %s223 = scalar_lea.vmem %s0, %s222
        %p224 = pneg %p41
        %p225 = pneg %p38
        %p226 = pneg %p62
        %p227 = pneg %p59
        %p228 = pneg %p83
        %p229 = pneg %p80
        %p230 = pneg %p104
        %p231 = pneg %p101
        %p232 = pneg %p125
        %p233 = pneg %p122
        %p234 = pneg %p146
        %p235 = pneg %p143
        %p236 = pneg %p172
        %p237 = pneg %p169
        %s238 = sand.u32 %s159, 1
        %s239 = scalar_lea.sflag [#allocation3], %s238
        %s240 = sand.u32 %s159, 1
        %s241 = smul.addr %s240, 8
        %s242 = scalar_lea.vmem [#allocation2], %s241
        %p243 = scmp.lt.s32.totalorder %s20, 1
        %s244 = scalar_select %p243, %s20, 1
        %s245 = smul.addr %s244, 8
        %s246 = scalar_lea.vmem %s0, %s245
        %v248 = vld [vmem:[%s5] sm:$0x1]
        %v249 = vld [vmem:[%s5 + $0x1] sm:$0x1]
        %v250 = vld [vmem:[%s5 + $0x2] sm:$0x1]
        %v251 = vld [vmem:[%s5 + $0x3] sm:$0x1]
        %v252 = vld [vmem:[%s5 + $0x4] sm:$0x1]
        %v253 = vld [vmem:[%s5 + $0x5] sm:$0x1]
        %v254 = vld [vmem:[%s5 + $0x6] sm:$0x1]
        %v255 = vld [vmem:[%s5 + $0x7] sm:$0x1]
        %v256 = vld [vmem:[%s246] sm:$0xff]
        %v257 = vpack.c.bf16 %v256, %v256
        %v258 = vld [vmem:[%s1] sm:$0xf]
        %v259 = vld [vmem:[%s1 + $0x4] sm:$0xf]
        %v260 = vld [vmem:[%s1 + $0x8] sm:$0xf]
        %v261 = vld [vmem:[%s1 + $0xc] sm:$0xf]
        %v262 = vperm.slane %v248, 0
        %v267 = vunpack.c.l.b16 %v258
        %v268 = vunpack.c.l.b16 %v259
        %v269 = vunpack.c.l.b16 %v260
        %v270 = vunpack.c.l.b16 %v261
        %v271 = vpack.c.b16 %v268, %v267
        %v272 = vpack.c.b16 %v270, %v269
        %vm275 = vcmask 261120
        %v277 = vsel %vm275, %v257, 0
        %279 = vmatpush.bf16.msra.mxu0 0
        %280 = vmatpush.bf16.msra.mxu0 0
        %281 = vmatpush.bf16.msra.mxu0 0
        %282 = vmatpush.bf16.msra.mxu0 0
        %283 = vmatpush.bf16.msra.mxu0 0
        %284 = vmatpush.bf16.msra.mxu0 0
        %285 = vmatpush.bf16.msra.mxu0 %v272
        %286 = vmatpush.bf16.msra.mxu0 %v271
        %287 = vmatmul.bf16.gmra.mxu0 %v277
        %v288 = vpop.f32.mrf.mxu0
        %v289 = vadd.f32 %v262, %v288
        %v290 = vpop.f32.mrf.mxu0
        %291 = vdwg.mxu0
        %v292 = vlaneseq
        %v293 = vshrl.u32 %v292, 7
        %v294 = vlaneseq
        %v295 = vand.u32 %v294, 127
        %vm296 = vcmp.ge.s32.totalorder %v293, %v295
        %v297 = vsel %vm296, 0.0, -1e+30
        %v298 = vpack.c.bf16 %v289, %v289
        %v300 = vunpack.c.l.b16 %v298
        %v301 = vpack.c.b16 %v300, %v300
        %302 = vrot.lane.b32.xlu0 %v301, 96
        %v303 = vpop.permute.xlu0 %302
        %vm304 = vcmask 64512
        %v306 = vsel %vm304, %v298, 0
        %v309 = vsel %vm304, %v303, 0
        %311 = vmatpush.bf16.xpose.msra.mxu0 0
        %312 = vmatpush.bf16.xpose.msra.mxu0 0
        %313 = vmatpush.bf16.xpose.msra.mxu0 0
        %314 = vmatpush.bf16.xpose.msra.mxu0 0
        %315 = vmatpush.bf16.xpose.msra.mxu0 0
        %316 = vmatpush.bf16.xpose.msra.mxu0 0
        %317 = vmatpush.bf16.xpose.msra.mxu0 0
        %318 = vmatpush.bf16.xpose.msra.mxu0 %v309
        %319 = vmatmul.bf16.gmra.mxu0 %v306
        %v320 = vpop.f32.mrf.mxu0
        %v321 = vadd.f32 0.0, %v320
        %v322 = vpop.f32.mrf.mxu0
        %323 = vdwg.mxu0
        %v324 = vmul.f32 %v321, 0.35355338
        %v325 = vadd.f32 %v324, %v297
        %v326 = vsel %vm304, %v325, -inf
        %327 = vmax.xlane.f32.xlu0 %v326
        %v328 = vpop.xlane.xlu0 %327
        %v329 = vsub.f32 %v325, %v328
        %v330 = vmul.f32 %v329, 1.442695
        %v331 = vpow.pop %v330
        %v332 = vsel %vm304, %v331, 0.0
        %333 = vadd.xlane.f32.xlu0 %v332
        %v334 = vpop.xlane.xlu0 %333
        %v335 = vrcp.pop %v334
        %v336 = vmul.f32 %v331, %v335
        %v337 = vpack.c.bf16 %v336, %v336
        %338 = vrot.lane.b32.xlu0 %v301, 64
        %v339 = vpop.permute.xlu0 %338
        %v341 = vsel %vm304, %v337, 0
        %vm343 = vcmask 1043456
        %v345 = vsel %vm343, %v339, 0
        %347 = vmatpush.bf16.msra.mxu0 0
        %348 = vmatpush.bf16.msra.mxu0 0
        %349 = vmatpush.bf16.msra.mxu0 0
        %350 = vmatpush.bf16.msra.mxu0 0
        %351 = vmatpush.bf16.msra.mxu0 0
        %352 = vmatpush.bf16.msra.mxu0 0
        %353 = vmatpush.bf16.msra.mxu0 0
        %354 = vmatpush.bf16.msra.mxu0 %v345
        %355 = vmatmul.bf16.gmra.mxu0 %v341
        %v356 = vpop.f32.mrf.mxu0
        %v357 = vadd.f32 0.0, %v356
        %v358 = vpop.f32.mrf.mxu0
        %359 = vdwg.mxu0
        %360 = vrot.lane.b32.xlu0 %v301, 120
        %v361 = vpop.permute.xlu0 %360
        %362 = vrot.lane.b32.xlu0 %v301, 88
        %v363 = vpop.permute.xlu0 %362
        %v365 = vsel %vm304, %v361, 0
        %v368 = vsel %vm304, %v363, 0
        %370 = vmatpush.bf16.xpose.msra.mxu0 0
        %371 = vmatpush.bf16.xpose.msra.mxu0 0
        %372 = vmatpush.bf16.xpose.msra.mxu0 0
        %373 = vmatpush.bf16.xpose.msra.mxu0 0
        %374 = vmatpush.bf16.xpose.msra.mxu0 0
        %375 = vmatpush.bf16.xpose.msra.mxu0 0
        %376 = vmatpush.bf16.xpose.msra.mxu0 0
        %377 = vmatpush.bf16.xpose.msra.mxu0 %v368
        %378 = vmatmul.bf16.gmra.mxu0 %v365
        %v379 = vpop.f32.mrf.mxu0
        %v380 = vadd.f32 0.0, %v379
        %v381 = vpop.f32.mrf.mxu0
        %382 = vdwg.mxu0
        %v383 = vmul.f32 %v380, 0.35355338
        %v384 = vadd.f32 %v383, %v297
        %v385 = vsel %vm304, %v384, -inf
        %386 = vmax.xlane.f32.xlu0 %v385
        %v387 = vpop.xlane.xlu0 %386
        %v388 = vsub.f32 %v384, %v387
        %v389 = vmul.f32 %v388, 1.442695
        %v390 = vpow.pop %v389
        %v391 = vsel %vm304, %v390, 0.0
        %392 = vadd.xlane.f32.xlu0 %v391
        %v393 = vpop.xlane.xlu0 %392
        %v394 = vrcp.pop %v393
        %v395 = vmul.f32 %v390, %v394
        %v396 = vpack.c.bf16 %v395, %v395
        %397 = vrot.lane.b32.xlu0 %v301, 56
        %v398 = vpop.permute.xlu0 %397
        %v400 = vsel %vm304, %v396, 0
        %v403 = vsel %vm343, %v398, 0
        %405 = vmatpush.bf16.msra.mxu0 0
        %406 = vmatpush.bf16.msra.mxu0 0
        %407 = vmatpush.bf16.msra.mxu0 0
        %408 = vmatpush.bf16.msra.mxu0 0
        %409 = vmatpush.bf16.msra.mxu0 0
        %410 = vmatpush.bf16.msra.mxu0 0
        %411 = vmatpush.bf16.msra.mxu0 0
        %412 = vmatpush.bf16.msra.mxu0 %v403
        %413 = vmatmul.bf16.gmra.mxu0 %v400
        %v414 = vpop.f32.mrf.mxu0
        %v415 = vadd.f32 0.0, %v414
        %v416 = vpop.f32.mrf.mxu0
        %417 = vdwg.mxu0
        %418 = vrot.lane.b32.xlu0 %v301, 112
        %v419 = vpop.permute.xlu0 %418
        %420 = vrot.lane.b32.xlu0 %v301, 80
        %v421 = vpop.permute.xlu0 %420
        %v423 = vsel %vm304, %v419, 0
        %v426 = vsel %vm304, %v421, 0
        %428 = vmatpush.bf16.xpose.msra.mxu0 0
        %429 = vmatpush.bf16.xpose.msra.mxu0 0
        %430 = vmatpush.bf16.xpose.msra.mxu0 0
        %431 = vmatpush.bf16.xpose.msra.mxu0 0
        %432 = vmatpush.bf16.xpose.msra.mxu0 0
        %433 = vmatpush.bf16.xpose.msra.mxu0 0
        %434 = vmatpush.bf16.xpose.msra.mxu0 0
        %435 = vmatpush.bf16.xpose.msra.mxu0 %v426
        %436 = vmatmul.bf16.gmra.mxu0 %v423
        %v437 = vpop.f32.mrf.mxu0
        %v438 = vadd.f32 0.0, %v437
        %v439 = vpop.f32.mrf.mxu0
        %440 = vdwg.mxu0
        %v441 = vmul.f32 %v438, 0.35355338
        %v442 = vadd.f32 %v441, %v297
        %v443 = vsel %vm304, %v442, -inf
        %444 = vmax.xlane.f32.xlu0 %v443
        %v445 = vpop.xlane.xlu0 %444
        %v446 = vsub.f32 %v442, %v445
        %v447 = vmul.f32 %v446, 1.442695
        %v448 = vpow.pop %v447
        %v449 = vsel %vm304, %v448, 0.0
        %450 = vadd.xlane.f32.xlu0 %v449
        %v451 = vpop.xlane.xlu0 %450
        %v452 = vrcp.pop %v451
        %v453 = vmul.f32 %v448, %v452
        %v454 = vpack.c.bf16 %v453, %v453
        %455 = vrot.lane.b32.xlu0 %v301, 48
        %v456 = vpop.permute.xlu0 %455
        %v458 = vsel %vm304, %v454, 0
        %v461 = vsel %vm343, %v456, 0
        %463 = vmatpush.bf16.msra.mxu0 0
        %464 = vmatpush.bf16.msra.mxu0 0
        %465 = vmatpush.bf16.msra.mxu0 0
        %466 = vmatpush.bf16.msra.mxu0 0
        %467 = vmatpush.bf16.msra.mxu0 0
        %468 = vmatpush.bf16.msra.mxu0 0
        %469 = vmatpush.bf16.msra.mxu0 0
        %470 = vmatpush.bf16.msra.mxu0 %v461
        %471 = vmatmul.bf16.gmra.mxu0 %v458
        %v472 = vpop.f32.mrf.mxu0
        %v473 = vadd.f32 0.0, %v472
        %v474 = vpop.f32.mrf.mxu0
        %475 = vdwg.mxu0
        %476 = vrot.lane.b32.xlu0 %v301, 104
        %v477 = vpop.permute.xlu0 %476
        %478 = vrot.lane.b32.xlu0 %v301, 72
        %v479 = vpop.permute.xlu0 %478
        %v481 = vsel %vm304, %v477, 0
        %v484 = vsel %vm304, %v479, 0
        %486 = vmatpush.bf16.xpose.msra.mxu0 0
        %487 = vmatpush.bf16.xpose.msra.mxu0 0
        %488 = vmatpush.bf16.xpose.msra.mxu0 0
        %489 = vmatpush.bf16.xpose.msra.mxu0 0
        %490 = vmatpush.bf16.xpose.msra.mxu0 0
        %491 = vmatpush.bf16.xpose.msra.mxu0 0
        %492 = vmatpush.bf16.xpose.msra.mxu0 0
        %493 = vmatpush.bf16.xpose.msra.mxu0 %v484
        %494 = vmatmul.bf16.gmra.mxu0 %v481
        %v495 = vpop.f32.mrf.mxu0
        %v496 = vadd.f32 0.0, %v495
        %v497 = vpop.f32.mrf.mxu0
        %498 = vdwg.mxu0
        %v499 = vmul.f32 %v496, 0.35355338
        %v500 = vadd.f32 %v499, %v297
        %v501 = vsel %vm304, %v500, -inf
        %502 = vmax.xlane.f32.xlu0 %v501
        %v503 = vpop.xlane.xlu0 %502
        %v504 = vsub.f32 %v500, %v503
        %v505 = vmul.f32 %v504, 1.442695
        %v506 = vpow.pop %v505
        %v507 = vsel %vm304, %v506, 0.0
        %508 = vadd.xlane.f32.xlu0 %v507
        %v509 = vpop.xlane.xlu0 %508
        %v510 = vrcp.pop %v509
        %v511 = vmul.f32 %v506, %v510
        %v512 = vpack.c.bf16 %v511, %v511
        %513 = vrot.lane.b32.xlu0 %v301, 40
        %v514 = vpop.permute.xlu0 %513
        %v516 = vsel %vm304, %v512, 0
        %v519 = vsel %vm343, %v514, 0
        %521 = vmatpush.bf16.msra.mxu0 0
        %522 = vmatpush.bf16.msra.mxu0 0
        %523 = vmatpush.bf16.msra.mxu0 0
        %524 = vmatpush.bf16.msra.mxu0 0
        %525 = vmatpush.bf16.msra.mxu0 0
        %526 = vmatpush.bf16.msra.mxu0 0
        %527 = vmatpush.bf16.msra.mxu0 0
        %528 = vmatpush.bf16.msra.mxu0 %v519
        %529 = vmatmul.bf16.gmra.mxu0 %v516
        %v530 = vpop.f32.mrf.mxu0
        %v531 = vadd.f32 0.0, %v530
        %v532 = vpop.f32.mrf.mxu0
        %533 = vdwg.mxu0
        %535 = vrot.lane.b32.xlu0 %v415, 8
        %v536 = vpop.permute.xlu0 %535
        %539 = vrot.lane.b32.xlu0 %v473, 16
        %v540 = vpop.permute.xlu0 %539
        %543 = vrot.lane.b32.xlu0 %v531, 24
        %v544 = vpop.permute.xlu0 %543
        %v546 = vsel %vm304, %v357, %v536
        %vm547 = vcmask 130048
        %v548 = vsel %vm547, %v546, %v540
        %vm549 = vcmask 195584
        %v550 = vsel %vm549, %v548, %v544
        %v551 = vpack.c.bf16 %v550, %v550
        %v552 = vld [vmem:[%s2] sm:$0xf]
        %v553 = vld [vmem:[%s2 + $0x4] sm:$0xf]
        %v554 = vld [vmem:[%s2 + $0x8] sm:$0xf]
        %v555 = vld [vmem:[%s2 + $0xc] sm:$0xf]
        %v556 = vperm.slane %v250, 0
        %v561 = vunpack.c.l.b16 %v552
        %v562 = vunpack.c.l.b16 %v553
        %v563 = vunpack.c.l.b16 %v554
        %v564 = vunpack.c.l.b16 %v555
        %v565 = vpack.c.b16 %v562, %v561
        %v566 = vpack.c.b16 %v564, %v563
        %v570 = vsel %vm275, %v551, 0
        %572 = vmatpush.bf16.msra.mxu0 0
        %573 = vmatpush.bf16.msra.mxu0 0
        %574 = vmatpush.bf16.msra.mxu0 0
        %575 = vmatpush.bf16.msra.mxu0 0
        %576 = vmatpush.bf16.msra.mxu0 0
        %577 = vmatpush.bf16.msra.mxu0 0
        %578 = vmatpush.bf16.msra.mxu0 %v566
        %579 = vmatpush.bf16.msra.mxu0 %v565
        %580 = vmatmul.bf16.gmra.mxu0 %v570
        %v581 = vpop.f32.mrf.mxu0
        %v582 = vadd.f32 %v556, %v581
        %v583 = vpop.f32.mrf.mxu0
        %584 = vdwg.mxu0
        %v585 = vadd.f32 %v256, %v582
        %v586 = vsel %vm275, %v585, 0.0
        %587 = vadd.xlane.f32.xlu0 %v586
        %v588 = vpop.xlane.xlu0 %587
        %v589 = vrcp.pop 32.0
        %v590 = vmul.f32 32.0, %v589
        %v591 = vsub.f32 1.0, %v590
        %v592 = vmul.f32 %v589, %v591
        %v593 = vadd.f32 %v589, %v592
        %vm594 = vweird.f32 %v589
        %v595 = vsel %vm594, %v589, %v593
        %v596 = vmul.f32 %v588, %v595
        %v597 = vsub.f32 %v585, %v596
        %v598 = vmul.f32 %v597, %v597
        %v599 = vsel %vm275, %v598, 0.0
        %600 = vadd.xlane.f32.xlu0 %v599
        %v601 = vpop.xlane.xlu0 %600
        %v602 = vmul.f32 %v601, %v595
        %v603 = vadd.f32 %v602, 1e-05
        %v604 = vrsqrt.pop %v603
        %v605 = vmul.f32 %v604, %v603
        %v606 = vmul.f32 %v605, %v604
        %v607 = vmul.f32 0.5, %v606
        %v608 = vsub.f32 1.5, %v607
        %v609 = vmul.f32 %v604, %v608
        %vm610 = vweird.f32 %v603
        %vm611 = vweird.f32 %v604
        %vm612 = vmor %vm610, %vm611
        %v613 = vsel %vm612, %v604, %v609
        %v614 = vmul.f32 %v597, %v613
        %v615 = vperm.slane %v251, 0
        %v616 = vmul.f32 %v614, %v615
        %v617 = vperm.slane %v252, 0
        %v618 = vadd.f32 %v616, %v617
        %v619 = vpack.c.bf16 %v618, %v618
        %v620 = vld [vmem:[%s3] sm:$0xf]
        %v621 = vld [vmem:[%s3 + $0x4] sm:$0xf]
        %v622 = vld [vmem:[%s3 + $0x8] sm:$0xf]
        %v623 = vld [vmem:[%s3 + $0xc] sm:$0xf]
        %v624 = vperm.slane %v249, 0
        %v629 = vunpack.c.l.b16 %v620
        %v630 = vunpack.c.l.b16 %v621
        %v631 = vunpack.c.l.b16 %v622
        %v632 = vunpack.c.l.b16 %v623
        %v633 = vpack.c.b16 %v630, %v629
        %v634 = vpack.c.b16 %v632, %v631
        %v638 = vsel %vm275, %v619, 0
        %640 = vmatpush.bf16.msra.mxu0 0
        %641 = vmatpush.bf16.msra.mxu0 0
        %642 = vmatpush.bf16.msra.mxu0 0
        %643 = vmatpush.bf16.msra.mxu0 0
        %644 = vmatpush.bf16.msra.mxu0 0
        %645 = vmatpush.bf16.msra.mxu0 0
        %646 = vmatpush.bf16.msra.mxu0 %v634
        %647 = vmatpush.bf16.msra.mxu0 %v633
        %648 = vmatmul.bf16.gmra.mxu0 %v638
        %v649 = vpop.f32.mrf.mxu0
        %v650 = vadd.f32 %v624, %v649
        %v651 = vpop.f32.mrf.mxu0
        %652 = vdwg.mxu0
        %v653 = vmul.f32 %v650, 0.5
        %v654 = vmul.f32 %v650, 0.70710677
        %v655 = vmul.f32 %v654, %v654
        %v656 = vmin.f32 16.0, %v655
        %v657 = vmul.f32 %v656, 2.1237322e-06
        %v658 = vadd.f32 %v657, 0.00028619796
        %v659 = vmul.f32 %v656, %v658
        %v660 = vadd.f32 %v659, 0.0036580483
        %v661 = vmul.f32 %v656, %v660
        %v662 = vadd.f32 %v661, 0.05243302
        %v663 = vmul.f32 %v656, %v662
        %v664 = vadd.f32 %v663, 0.18741608
        %v665 = vmul.f32 %v656, %v664
        %v666 = vadd.f32 %v665, 1.1283791
        %v667 = vmul.f32 %v654, %v666
        %v668 = vmul.f32 %v656, 3.8918573e-05
        %v669 = vadd.f32 %v668, 0.001143296
        %v670 = vmul.f32 %v656, %v669
        %v671 = vadd.f32 %v670, 0.014752088
        %v672 = vmul.f32 %v656, %v671
        %v673 = vadd.f32 %v672, 0.112945676
        %v674 = vmul.f32 %v656, %v673
        %v675 = vadd.f32 %v674, 0.4994258
        %v676 = vmul.f32 %v656, %v675
        %v677 = vadd.f32 %v676, 1.0
        %v678 = vrcp.pop %v677
        %v679 = vmul.f32 %v677, %v678
        %v680 = vsub.f32 1.0, %v679
        %v681 = vmul.f32 %v678, %v680
        %v682 = vadd.f32 %v678, %v681
        %vm683 = vweird.f32 %v677
        %vm684 = vweird.f32 %v678
        %vm685 = vmor %vm683, %vm684
        %v686 = vsel %vm685, %v678, %v682
        %v687 = vand.u32 2147483647, %v677
        %vm688 = vcmp.eq.f32.partialorder %v687, 8.507059e+37
        %v689 = vand.u32 %v677, 2147483648
        %v690 = vor.u32 1.1754944e-38, %v689
        %v691 = vsel %vm688, %v690, %v686
        %v692 = vmul.f32 %v667, %v691
        %v693 = vmin.f32 %v692, 1.0
        %v694 = vmax.f32 %v693, -1.0
        %v695 = vadd.f32 %v694, 1.0
        %v696 = vmul.f32 %v653, %v695
        %v697 = vpack.c.bf16 %v696, %v696
        %v698 = vld [vmem:[%s4] sm:$0xf]
        %v699 = vld [vmem:[%s4 + $0x4] sm:$0xf]
        %v700 = vld [vmem:[%s4 + $0x8] sm:$0xf]
        %v701 = vld [vmem:[%s4 + $0xc] sm:$0xf]
        %v702 = vld [vmem:[%s4 + $0x10] sm:$0xf]
        %v703 = vld [vmem:[%s4 + $0x14] sm:$0xf]
        %v704 = vld [vmem:[%s4 + $0x18] sm:$0xf]
        %v705 = vld [vmem:[%s4 + $0x1c] sm:$0xf]
        %v706 = vld [vmem:[%s4 + $0x20] sm:$0xf]
        %v707 = vld [vmem:[%s4 + $0x24] sm:$0xf]
        %v708 = vld [vmem:[%s4 + $0x28] sm:$0xf]
        %v709 = vld [vmem:[%s4 + $0x2c] sm:$0xf]
        %v710 = vld [vmem:[%s4 + $0x30] sm:$0xf]
        %v711 = vld [vmem:[%s4 + $0x34] sm:$0xf]
        %v712 = vld [vmem:[%s4 + $0x38] sm:$0xf]
        %v713 = vld [vmem:[%s4 + $0x3c] sm:$0xf]
        %v714 = vperm.slane %v253, 0
        %v731 = vunpack.c.l.b16 %v698
        %v732 = vunpack.c.l.b16 %v699
        %v733 = vunpack.c.l.b16 %v700
        %v734 = vunpack.c.l.b16 %v701
        %v735 = vunpack.c.l.b16 %v702
        %v736 = vunpack.c.l.b16 %v703
        %v737 = vunpack.c.l.b16 %v704
        %v738 = vunpack.c.l.b16 %v705
        %v739 = vunpack.c.l.b16 %v706
        %v740 = vunpack.c.l.b16 %v707
        %v741 = vunpack.c.l.b16 %v708
        %v742 = vunpack.c.l.b16 %v709
        %v743 = vunpack.c.l.b16 %v710
        %v744 = vunpack.c.l.b16 %v711
        %v745 = vunpack.c.l.b16 %v712
        %v746 = vunpack.c.l.b16 %v713
        %v747 = vpack.c.b16 %v732, %v731
        %v748 = vpack.c.b16 %v734, %v733
        %v749 = vpack.c.b16 %v736, %v735
        %v750 = vpack.c.b16 %v738, %v737
        %v751 = vpack.c.b16 %v740, %v739
        %v752 = vpack.c.b16 %v742, %v741
        %v753 = vpack.c.b16 %v744, %v743
        %v754 = vpack.c.b16 %v746, %v745
        %763 = vmatpush.bf16.msra.mxu0 %v754
        %764 = vmatpush.bf16.msra.mxu0 %v753
        %765 = vmatpush.bf16.msra.mxu0 %v752
        %766 = vmatpush.bf16.msra.mxu0 %v751
        %767 = vmatpush.bf16.msra.mxu0 %v750
        %768 = vmatpush.bf16.msra.mxu0 %v749
        %769 = vmatpush.bf16.msra.mxu0 %v748
        %770 = vmatpush.bf16.msra.mxu0 %v747
        %771 = vmatmul.bf16.gmra.mxu0 %v697
        %v772 = vpop.f32.mrf.mxu0
        %v773 = vadd.f32 %v714, %v772
        %v774 = vpop.f32.mrf.mxu0
        %775 = vdwg.mxu0
        %v776 = vadd.f32 %v618, %v773
        %v777 = vsel %vm275, %v776, 0.0
        %778 = vadd.xlane.f32.xlu0 %v777
        %v779 = vpop.xlane.xlu0 %778
        %v780 = vmul.f32 %v779, %v595
        %v781 = vsub.f32 %v776, %v780
        %v782 = vmul.f32 %v781, %v781
        %v783 = vsel %vm275, %v782, 0.0
        %784 = vadd.xlane.f32.xlu0 %v783
        %v785 = vpop.xlane.xlu0 %784
        %v786 = vmul.f32 %v785, %v595
        %v787 = vadd.f32 %v786, 1e-05
        %v788 = vrsqrt.pop %v787
        %v789 = vmul.f32 %v788, %v787
        %v790 = vmul.f32 %v789, %v788
        %v791 = vmul.f32 0.5, %v790
        %v792 = vsub.f32 1.5, %v791
        %v793 = vmul.f32 %v788, %v792
        %vm794 = vweird.f32 %v787
        %vm795 = vweird.f32 %v788
        %vm796 = vmor %vm794, %vm795
        %v797 = vsel %vm796, %v788, %v793
        %v798 = vmul.f32 %v781, %v797
        %v799 = vperm.slane %v254, 0
        %v800 = vmul.f32 %v798, %v799
        %v801 = vperm.slane %v255, 0
        %v802 = vadd.f32 %v800, %v801
        %803 = vst.msk [vmem:[%s242] sm:$0xff] %vm275, %v802
        %s804 = sand.u32 %s159, 1
        %s805 = scalar_lea.sflag [#allocation3], %s804
        %s806 = sand.u32 %s159, 1
        %s807 = smul.addr %s806, 8
        %s808 = scalar_lea.vmem [#allocation2], %s807
        // Predicated region
        $region45: #{tpu_custom_call.1} parent=43 // pred_check
          %p809 = pneg %p169
        $region46: #{tpu_custom_call.1} parent=43 // pred_check_branch
          %811 = sbr.rel (%p809) target = $region48
        $region47: #{tpu_custom_call.1} parent=43 // pred_region
          %813 = vsyncadd %s805, 0
          %s814 = smul.addr %s20, 8
          %s815 = scalar_lea.hbm %s6, %s814
          %s817 = sshll.u32 %s808, 4
          %s818 = int_to_ptr.vmem [resolvable:$true] %s817
          %s819 = sshll.u32 %s815, 4
          %s820 = int_to_ptr.hbm [resolvable:$true] %s819
          %822 = dma.vmem_to_hbm [thread:$0]  %s818, 128, %s820, %s805
        $region48: #{tpu_custom_call.1} parent=43 // pred_fallthru
          _
      $region44: #{tpu_custom_call.1} parent=5 // pred_fallthru
        _
      %p823 = scmp.le.s32.totalorder 2, %s15
      // Predicated region
      $region49: #{tpu_custom_call.1} parent=5 // pred_check
        %p824 = pneg %p823
      $region50: #{tpu_custom_call.1} parent=5 // pred_check_branch
        %826 = sbr.rel (%p824) target = $region52
      $region51: #{tpu_custom_call.1} parent=5 // pred_region
        %s827 = ssub.s32 %s15, 2
        // Predicated region
        $region53: #{tpu_custom_call.1} parent=51 // pred_check
          %p828 = pneg %p175
        $region54: #{tpu_custom_call.1} parent=51 // pred_check_branch
          %830 = sbr.rel (%p828) target = $region56
        $region55: #{tpu_custom_call.1} parent=51 // pred_region
          %s831 = sand.u32 %s160, 1
          %s832 = scalar_lea.sflag [#allocation3], %s831
          %s833 = sand.u32 %s160, 1
          %s834 = smul.addr %s833, 8
          %s835 = scalar_lea.vmem [#allocation2], %s834
          %837 = dma.done %s832, 128
        $region56: #{tpu_custom_call.1} parent=51 // pred_fallthru
          _
      $region52: #{tpu_custom_call.1} parent=5 // pred_fallthru
        _
    $region6: #{tpu_custom_call.1} parent=1 // loop_footer
      %s19 = sadd.s32 1, %s15
    $region7: #{tpu_custom_call.1} parent=1 // loop_footer_branch
      %14 = sbr.rel target = $region3
    $region8: #{tpu_custom_call.1} parent=1 // loop_exit
      _
    %838 = vsyncpa [#allocation3], 1
    %s839 = scalar_lea.sflag [#allocation3], 1
    %840 = vsyncpa %s839, 1

</llo_original>
